<compile_context>
chip_gen: v7x
topology: tpu7x:2x2x1
jax: 0.10.0
libtpu: 0.0.40
codegen_flags: <defaults>
</compile_context>

<pallas_src>
import jax
import jax.numpy as jnp
from jax import lax
from jax.experimental import pallas as pl
from jax.experimental.pallas import tpu as pltpu

_LANE = 128


def downsample_kernel(xeo_ref, halo_ref, wc_ref, w3_ref, w0_ref, b_ref, o_ref):
    """One grid step = (batch b, lane tile j) of output positions.

    xeo_ref  : (1, 2C, Lt)   rows [0:C]  = x_even[i] = x[2i]
                             rows [C:2C] = x_odd[i]  = x[2i+1]
    halo_ref : (1, 1, 2C, 1) rows [0:C]  = x_even just past this tile (for tap k=3)
                             rows [C:2C] = x_odd just before this tile (for tap k=0)
    wc_ref   : (C, 2C)       [W_k1 | W_k2]
    w3_ref   : (C, C)        W_k3
    w0_ref   : (C, C)        W_k0
    b_ref    : (C, 1)        bias
    o_ref    : (1, C, Lt)    lane-dense output tile
    """
    C = o_ref.shape[1]
    xeo = xeo_ref[0]                           # (2C, Lt)
    xe, xo = xeo[:C], xeo[C:]                  # (C, Lt) each
    halo = halo_ref[0, 0]                      # (2C, 1)
    he, ho = halo[:C], halo[C:]                # (C, 1) each

    # Shifted taps: pure intra-tile lane shifts; the single element that crosses
    # the tile boundary comes from the halo column (VMEM-only data movement).
    tap3 = jnp.concatenate([xe[:, 1:], he], axis=1)    # x_even[i+1]
    tap0 = jnp.concatenate([ho, xo[:, :-1]], axis=1)   # x_odd[i-1]

    out = (jnp.dot(wc_ref[...], xeo, preferred_element_type=jnp.float32)
           + jnp.dot(w3_ref[...], tap3, preferred_element_type=jnp.float32)
           + jnp.dot(w0_ref[...], tap0, preferred_element_type=jnp.float32)
           + b_ref[...])
    o_ref[0] = out.astype(o_ref.dtype)


def _pick_l_tile(L_out, B, C, *, vmem_budget_bytes=8 << 20):
    """Largest lane tile (multiple of 128, <=8192) that fits a conservative VMEM
    budget, with at least 2 grid cells when possible (v7x has 2 TensorCores)."""
    l_pad = pl.cdiv(max(L_out, 1), _LANE) * _LANE
    w_bytes = 4 * (4 * C * C + C)                # resident weight/bias blocks (f32)
    budget = max(vmem_budget_bytes - w_bytes, 1 << 20)
    per_lane_bytes = 16 * C * 4                  # dbl-buffered in/out blocks + f32 temps
    cap = max(_LANE, (budget // per_lane_bytes) // _LANE * _LANE)
    l_tile = min(l_pad, cap, 8192)
    while B * pl.cdiv(l_pad, l_tile) < 2 and l_tile > _LANE:
        l_tile = max(_LANE, (l_tile // 2) // _LANE * _LANE)
    return l_tile


def downsample_forward(x, weight, bias, *, l_tile=None, compute_dtype=None):
    """x: (B, C, L); weight: (C, C, 4); bias: (C,). Returns (B, C, L_out)."""
    B, C, L = x.shape
    C_out, C_in, K = weight.shape
    assert C_out == C and C_in == C and K == 4 and L >= 2
    stride, pad = 2, 1
    L_out = (L + 2 * pad - K) // stride + 1      # == L // 2

    if l_tile is None:
        l_tile = _pick_l_tile(L_out, B, C)
    n_tiles = pl.cdiv(L_out, l_tile)
    L_pad = n_tiles * l_tile                     # lane-dense, 128-aligned output width

    # --- even/odd split (one fused XLA pass, same total bytes as x) ----------
    xe = x[:, :, 0::2]                           # (B, C, ceil(L/2))
    xo = x[:, :, 1::2]                           # (B, C, L//2)
    xe_p = jnp.pad(xe, ((0, 0), (0, 0), (0, L_pad + 1 - xe.shape[-1])))
    xo_p = jnp.pad(xo, ((0, 0), (0, 0), (0, L_pad - xo.shape[-1])))
    xeo = jnp.concatenate([xe_p[:, :, :L_pad], xo_p], axis=1)       # (B, 2C, L_pad)

    # --- per-tile halo columns (tiny: B * n_tiles * 2C floats) ----------------
    he = xe_p[:, :, l_tile::l_tile]              # (B, C, n_tiles): x_even[(j+1)*Lt]
    ho_next = xo_p[:, :, l_tile - 1::l_tile]     # (B, C, n_tiles): x_odd[(j+1)*Lt - 1]
    ho = jnp.concatenate([jnp.zeros_like(ho_next[:, :, :1]),
                          ho_next[:, :, :n_tiles - 1]], axis=2)     # x_odd[j*Lt - 1]
    halo = jnp.concatenate([he, ho], axis=1)                        # (B, 2C, n_tiles)
    halo = jnp.transpose(halo, (0, 2, 1))[..., None]                # (B, n_tiles, 2C, 1)

    # --- weights, rearranged once ---------------------------------------------
    wc = jnp.concatenate([weight[:, :, 1], weight[:, :, 2]], axis=1)  # (C, 2C)
    w3 = weight[:, :, 3]                                              # (C, C)
    w0 = weight[:, :, 0]                                              # (C, C)
    b2 = bias.reshape(C, 1).astype(jnp.float32)

    if compute_dtype is not None:
        # Optional: halve the dominant HBM read stream; accumulation stays f32.
        xeo = xeo.astype(compute_dtype)
        halo = halo.astype(compute_dtype)
        wc, w3, w0 = (w.astype(compute_dtype) for w in (wc, w3, w0))

    # Note: for tiny L_out one could additionally raise the input pipeline depth
    # (pipeline_mode=pl.Buffered(3)) to hide DMA issue latency; with the large
    # budget-driven tiles above the DMA fixed cost is already amortized.
    out = pl.pallas_call(
        downsample_kernel,
        out_shape=jax.ShapeDtypeStruct((B, C, L_pad), x.dtype),
        grid=(B, n_tiles),
        in_specs=[
            pl.BlockSpec((1, 2 * C, l_tile), lambda b, j: (b, 0, j)),
            pl.BlockSpec((1, 1, 2 * C, 1), lambda b, j: (b, j, 0, 0)),
            pl.BlockSpec((C, 2 * C), lambda b, j: (0, 0)),
            pl.BlockSpec((C, C), lambda b, j: (0, 0)),
            pl.BlockSpec((C, C), lambda b, j: (0, 0)),
            pl.BlockSpec((C, 1), lambda b, j: (0, 0)),
        ],
        out_specs=pl.BlockSpec((1, C, l_tile), lambda b, j: (b, 0, j)),
        compiler_params=pltpu.CompilerParams(
            dimension_semantics=("parallel", "parallel"),
            vmem_limit_bytes=32 * 1024 * 1024),
    )(xeo, halo, wc, w3, w0, b2)

    return out[:, :, :L_out] if L_pad != L_out else out


def downsample_reference(x, weight, bias):
    """Pure-JAX replica of the PyTorch Conv1d(k=4, stride=2, pad=1) forward."""
    dn = lax.conv_dimension_numbers(x.shape, weight.shape, ('NCH', 'OIH', 'NCH'))
    y = lax.conv_general_dilated(x, weight, window_strides=(2,),
                                 padding=((1, 1),), dimension_numbers=dn)
    return y + bias[None, :, None]


if __name__ == "__main__":
    # small shapes consistent with the module (L_out = 128 -> one lane-dense tile)
    B, C, L = 2, 8, 256

    key = jax.random.PRNGKey(0)
    kx, kw, kb = jax.random.split(key, 3)

    x = jax.random.normal(kx, (B, C, L), dtype=jnp.float32)
    w = jax.random.normal(kw, (C, C, 4), dtype=jnp.float32) * (1.0 / (C * 4) ** 0.5)
    b = jax.random.normal(kb, (C,), dtype=jnp.float32) * 0.1

    out = jax.block_until_ready(downsample_forward(x, w, b))
    ref = downsample_reference(x, w, b)

    assert out.shape == (B, C, L // 2)
    assert jnp.allclose(out, ref, atol=1e-4, rtol=1e-4), "mismatch vs reference"

    print("KERNEL_OK")
</pallas_src>

<mosaic_0001>
module attributes {stable_mosaic.version = 11 : i64} {
  func.func @downsample_kernel(%arg0: i32, %arg1: i32, %arg2: memref<1x16x128xf32, #tpu.memory_space<vmem>>, %arg3: memref<1x1x16x1xf32, #tpu.memory_space<vmem>>, %arg4: memref<8x16xf32, #tpu.memory_space<vmem>>, %arg5: memref<8x8xf32, #tpu.memory_space<vmem>>, %arg6: memref<8x8xf32, #tpu.memory_space<vmem>>, %arg7: memref<8x1xf32, #tpu.memory_space<vmem>>, %arg8: memref<1x8x128xf32, #tpu.memory_space<vmem>>) attributes {dimension_semantics = [#tpu.dimension_semantics<parallel>, #tpu.dimension_semantics<parallel>], iteration_bounds = array<i64: 2, 1>, scalar_prefetch = 0 : i64, scratch_operands = 0 : i64, tpu.core_type = #tpu.core_type<tc>, window_params = [{transform_indices = @transform_0, window_bounds = array<i64: 1, 16, 128>}, {transform_indices = @transform_1, window_bounds = array<i64: 1, 1, 16, 1>}, {pipeline_mode = #tpu.pipeline_mode<synchronous>, transform_indices = @transform_2, window_bounds = array<i64: 8, 16>}, {pipeline_mode = #tpu.pipeline_mode<synchronous>, transform_indices = @transform_3, window_bounds = array<i64: 8, 8>}, {pipeline_mode = #tpu.pipeline_mode<synchronous>, transform_indices = @transform_4, window_bounds = array<i64: 8, 8>}, {pipeline_mode = #tpu.pipeline_mode<synchronous>, transform_indices = @transform_5, window_bounds = array<i64: 8, 1>}, {transform_indices = @transform_6, window_bounds = array<i64: 1, 8, 128>}]} {
    %c0 = arith.constant 0 : index
    %c0_0 = arith.constant 0 : index
    %c0_1 = arith.constant 0 : index
    %0 = vector.load %arg2[%c0, %c0_0, %c0_1] : memref<1x16x128xf32, #tpu.memory_space<vmem>>, vector<1x16x128xf32>
    %1 = vector.shape_cast %0 : vector<1x16x128xf32> to vector<16x128xf32>
    %2 = vector.extract_strided_slice %1 {offsets = [0, 0], sizes = [8, 128], strides = [1, 1]} : vector<16x128xf32> to vector<8x128xf32>
    %3 = vector.extract_strided_slice %1 {offsets = [8, 0], sizes = [8, 128], strides = [1, 1]} : vector<16x128xf32> to vector<8x128xf32>
    %c0_2 = arith.constant 0 : index
    %c0_3 = arith.constant 0 : index
    %c0_4 = arith.constant 0 : index
    %c0_5 = arith.constant 0 : index
    %4 = vector.load %arg3[%c0_2, %c0_3, %c0_4, %c0_5] : memref<1x1x16x1xf32, #tpu.memory_space<vmem>>, vector<1x1x16x1xf32>
    %5 = vector.shape_cast %4 : vector<1x1x16x1xf32> to vector<16x1xf32>
    %6 = vector.extract_strided_slice %5 {offsets = [0, 0], sizes = [8, 1], strides = [1, 1]} : vector<16x1xf32> to vector<8x1xf32>
    %7 = vector.extract_strided_slice %5 {offsets = [8, 0], sizes = [8, 1], strides = [1, 1]} : vector<16x1xf32> to vector<8x1xf32>
    %8 = vector.extract_strided_slice %2 {offsets = [0, 1], sizes = [8, 127], strides = [1, 1]} : vector<8x128xf32> to vector<8x127xf32>
    %9 = tpu.concatenate %8, %6 in 1 : vector<8x127xf32>, vector<8x1xf32> -> vector<8x128xf32>
    %10 = vector.extract_strided_slice %3 {offsets = [0, 0], sizes = [8, 127], strides = [1, 1]} : vector<8x128xf32> to vector<8x127xf32>
    %11 = tpu.concatenate %7, %10 in 1 : vector<8x1xf32>, vector<8x127xf32> -> vector<8x128xf32>
    %c0_6 = arith.constant 0 : index
    %c0_7 = arith.constant 0 : index
    %12 = vector.load %arg4[%c0_6, %c0_7] : memref<8x16xf32, #tpu.memory_space<vmem>>, vector<8x16xf32>
    %cst = arith.constant dense<0.000000e+00> : vector<8x128xf32>
    %13 = tpu.matmul %12, %1, %cst {dimension_numbers = #tpu.dot_dimension_numbers<[1], [0], [0], [1], [0, 0, 1, 1], [], []>} : vector<8x16xf32>, vector<16x128xf32>, vector<8x128xf32> -> vector<8x128xf32>
    %c0_8 = arith.constant 0 : index
    %c0_9 = arith.constant 0 : index
    %14 = vector.load %arg5[%c0_8, %c0_9] : memref<8x8xf32, #tpu.memory_space<vmem>>, vector<8x8xf32>
    %cst_10 = arith.constant dense<0.000000e+00> : vector<8x128xf32>
    %15 = tpu.matmul %14, %9, %cst_10 {dimension_numbers = #tpu.dot_dimension_numbers<[1], [0], [0], [1], [0, 0, 1, 1], [], []>} : vector<8x8xf32>, vector<8x128xf32>, vector<8x128xf32> -> vector<8x128xf32>
    %16 = arith.addf %13, %15 : vector<8x128xf32>
    %c0_11 = arith.constant 0 : index
    %c0_12 = arith.constant 0 : index
    %17 = vector.load %arg6[%c0_11, %c0_12] : memref<8x8xf32, #tpu.memory_space<vmem>>, vector<8x8xf32>
    %cst_13 = arith.constant dense<0.000000e+00> : vector<8x128xf32>
    %18 = tpu.matmul %17, %11, %cst_13 {dimension_numbers = #tpu.dot_dimension_numbers<[1], [0], [0], [1], [0, 0, 1, 1], [], []>} : vector<8x8xf32>, vector<8x128xf32>, vector<8x128xf32> -> vector<8x128xf32>
    %19 = arith.addf %16, %18 : vector<8x128xf32>
    %c0_14 = arith.constant 0 : index
    %c0_15 = arith.constant 0 : index
    %20 = vector.load %arg7[%c0_14, %c0_15] : memref<8x1xf32, #tpu.memory_space<vmem>>, vector<8x1xf32>
    %21 = vector.broadcast %20 : vector<8x1xf32> to vector<8x128xf32>
    %22 = arith.addf %19, %21 : vector<8x128xf32>
    %c0_16 = arith.constant 0 : index
    %c0_17 = arith.constant 0 : index
    %c0_18 = arith.constant 0 : index
    %23 = vector.load %arg8[%c0_16, %c0_17, %c0_18] : memref<1x8x128xf32, #tpu.memory_space<vmem>>, vector<1x8x128xf32>
    %24 = vector.shape_cast %23 : vector<1x8x128xf32> to vector<8x128xf32>
    %25 = vector.shape_cast %22 : vector<8x128xf32> to vector<1x8x128xf32>
    tpu.vector_store %arg8[%c0_16, %c0_17, %c0_18], %25 {strides = array<i32>} : memref<1x8x128xf32, #tpu.memory_space<vmem>>, vector<1x8x128xf32>,
    return
  }
  func.func @transform_0(%arg0: i32, %arg1: i32) -> (i32, i32, i32) {
    %c0_i32 = arith.constant 0 : i32
    %c0_i32_0 = arith.constant 0 : i32
    return %arg0, %c0_i32, %arg1 : i32, i32, i32
  }
  func.func @transform_1(%arg0: i32, %arg1: i32) -> (i32, i32, i32, i32) {
    %c0_i32 = arith.constant 0 : i32
    %c0_i32_0 = arith.constant 0 : i32
    %c0_i32_1 = arith.constant 0 : i32
    return %arg0, %arg1, %c0_i32, %c0_i32_0 : i32, i32, i32, i32
  }
  func.func @transform_2(%arg0: i32, %arg1: i32) -> (i32, i32) {
    %c0_i32 = arith.constant 0 : i32
    %c0_i32_0 = arith.constant 0 : i32
    %c0_i32_1 = arith.constant 0 : i32
    return %c0_i32, %c0_i32_0 : i32, i32
  }
  func.func @transform_3(%arg0: i32, %arg1: i32) -> (i32, i32) {
    %c0_i32 = arith.constant 0 : i32
    %c0_i32_0 = arith.constant 0 : i32
    %c0_i32_1 = arith.constant 0 : i32
    return %c0_i32, %c0_i32_0 : i32, i32
  }
  func.func @transform_4(%arg0: i32, %arg1: i32) -> (i32, i32) {
    %c0_i32 = arith.constant 0 : i32
    %c0_i32_0 = arith.constant 0 : i32
    %c0_i32_1 = arith.constant 0 : i32
    return %c0_i32, %c0_i32_0 : i32, i32
  }
  func.func @transform_5(%arg0: i32, %arg1: i32) -> (i32, i32) {
    %c0_i32 = arith.constant 0 : i32
    %c0_i32_0 = arith.constant 0 : i32
    %c0_i32_1 = arith.constant 0 : i32
    return %c0_i32, %c0_i32_0 : i32, i32
  }
  func.func @transform_6(%arg0: i32, %arg1: i32) -> (i32, i32, i32) {
    %c0_i32 = arith.constant 0 : i32
    %c0_i32_0 = arith.constant 0 : i32
    return %arg0, %c0_i32, %arg1 : i32, i32, i32
  }
}

</mosaic_0001>

<llo_original>
// kernel: tpu_custom_call.1
$region0: #{tpu_custom_call.1}
  #allocation0 [shape = 'u32[]', space=smem, size = 0x4, offset = 0x4, fixed_abs, tag = 'smem constant byte address 0x4 - core index']
  #allocation1 [shape = 'u32[144,128]{1,0:T(1,128)}', space=vmem, size = 0x12000, scoped, tag = 'internal scratch']
  %s0 = inlined_call_operand.vmem [shape: f32[2,16,128], index: 0, kind: input, shape index: {}]
  %s1 = inlined_call_operand.vmem [shape: f32[2,1,16,1], index: 1, kind: input, shape index: {}]
  %s2 = inlined_call_operand.vmem [shape: f32[8,16], index: 2, kind: input, shape index: {}]
  %s3 = inlined_call_operand.vmem [shape: f32[8,8], index: 3, kind: input, shape index: {}]
  %s4 = inlined_call_operand.vmem [shape: f32[8,8], index: 4, kind: input, shape index: {}]
  %s5 = inlined_call_operand.vmem [shape: f32[8,1], index: 5, kind: input, shape index: {}]
  %s6 = inlined_call_operand.hbm [shape: f32[2,8,128], index: 6, kind: output, shape index: {}]
  %s7 = sld [smem:[#allocation0]]
  $region57: #{tpu_custom_call.1} parent=0
    _
  %s9 = ssub.s32 1, %s7
  %s10 = scalar_select 0, %s9, %s7
  $region1: #{tpu_custom_call.1} parent=0
    #allocation2 [shape = 'u8[8192]{0}', space=vmem, size = 0x2000, scoped, tag = 'output window, operand 0']
    #allocation3 [shape = 's32[2]{0}', space=sflag, size = 0x8, scoped, tag = 'scoped memory for tpu_custom_call.1']
    %11 = vsyncpa [#allocation3], 0
    %s12 = scalar_lea.sflag [#allocation3], 1
    %13 = vsyncpa %s12, 0
    loop: start=0, step=1, limit=4
    $region2: #{tpu_custom_call.1} parent=1 // loop_pre_header
      _
    $region3: #{tpu_custom_call.1} parent=1 // loop_header
      %s15 = sphi 0, %s19
      %p16 = scmp.ge.s32.totalorder %s15, 4
      %s22 = sphi 0, %s34
      %s23 = sphi 0, %s30
      %s24 = sphi 0, %s22
      %s25 = sphi 0, %s23
      %s26 = sphi 0, %s24
      %s27 = sphi 0, %s25
      %s39 = sphi 0, %s41
      %s42 = sphi 0, %s39
      %s43 = sphi 0, %s42
      %s59 = sphi 0, %s43
      %s67 = sphi 0, %s69
      %s70 = sphi 0, %s67
      %s71 = sphi 0, %s70
      %s87 = sphi 0, %s71
      %s91 = sphi 0, %s91
      %s93 = sphi 0, %s91
      %s94 = sphi 0, %s93
      %s108 = sphi 0, %s94
      %s112 = sphi 0, %s112
      %s114 = sphi 0, %s112
      %s115 = sphi 0, %s114
      %s129 = sphi 0, %s115
      %s133 = sphi 0, %s133
      %s135 = sphi 0, %s133
      %s136 = sphi 0, %s135
      %s150 = sphi 0, %s136
      %s154 = sphi 0, %s154
      %s156 = sphi 0, %s154
      %s157 = sphi 0, %s156
      %s171 = sphi 0, %s157
      %s179 = sphi 0, %s181
      %s182 = sphi 0, %s179
      %s183 = sphi 0, %s182
      %s199 = sphi 0, %s183
    $region4: #{tpu_custom_call.1} parent=1 // loop_header_branch
      %18 = sbr.rel (%p16) target = $region8
    $region5: #{tpu_custom_call.1} parent=1 // loop_body
      %s20 = ssub.s32 %s15, 1
      %s21 = ssub.s32 %s15, 2
      %s28 = sadd.s32 1, %s23
      %p29 = scmp.ge.s32.totalorder %s28, 1
      %s30 = scalar_select %p29, 0, %s28
      %s31 = sadd.s32 1, %s22
      %s32 = scalar_select %p29, %s31, %s22
      %p33 = scmp.ge.s32.totalorder %s32, 2
      %s34 = scalar_select %p33, 0, %s32
      %s35 = ssub.s32 %s22, %s34
      %s36 = ssub.s32 %s23, %s30
      %s37 = sor.u32 %s35, %s36
      %p38 = scmp.eq.s32.totalorder %s37, 0
      %s40 = sadd.s32 %s39, 1
      %s41 = scalar_select %p38, %s39, %s40
      %p44 = pneg %p38
      %p45 = scmp.eq.s32.totalorder %s15, 1
      %p46 = por %p44, %p45
      %p47 = scmp.ne.s32.totalorder %s39, %s42
      %p48 = scmp.eq.s32.totalorder %s15, 0
      %p49 = por %p47, %p48
      %p50 = scmp.ne.s32.totalorder %s39, %s42
      %p51 = scmp.eq.s32.totalorder %s20, 1
      %p52 = por %p50, %p51
      %p53 = scmp.ne.s32.totalorder %s42, %s43
      %p54 = scmp.eq.s32.totalorder %s20, 0
      %p55 = por %p53, %p54
      %p56 = scmp.ne.s32.totalorder %s42, %s43
      %p57 = scmp.eq.s32.totalorder %s21, 1
      %p58 = por %p56, %p57
      %p60 = scmp.ne.s32.totalorder %s43, %s59
      %p61 = scmp.eq.s32.totalorder %s21, 0
      %p62 = por %p60, %p61
      %s63 = ssub.s32 %s22, %s34
      %s64 = ssub.s32 %s23, %s30
      %s65 = sor.u32 %s63, %s64
      %p66 = scmp.eq.s32.totalorder %s65, 0
      %s68 = sadd.s32 %s67, 1
      %s69 = scalar_select %p66, %s67, %s68
      %p72 = pneg %p66
      %p73 = scmp.eq.s32.totalorder %s15, 1
      %p74 = por %p72, %p73
      %p75 = scmp.ne.s32.totalorder %s67, %s70
      %p76 = scmp.eq.s32.totalorder %s15, 0
      %p77 = por %p75, %p76
      %p78 = scmp.ne.s32.totalorder %s67, %s70
      %p79 = scmp.eq.s32.totalorder %s20, 1
      %p80 = por %p78, %p79
      %p81 = scmp.ne.s32.totalorder %s70, %s71
      %p82 = scmp.eq.s32.totalorder %s20, 0
      %p83 = por %p81, %p82
      %p84 = scmp.ne.s32.totalorder %s70, %s71
      %p85 = scmp.eq.s32.totalorder %s21, 1
      %p86 = por %p84, %p85
      %p88 = scmp.ne.s32.totalorder %s71, %s87
      %p89 = scmp.eq.s32.totalorder %s21, 0
      %p90 = por %p88, %p89
      %s92 = sadd.s32 %s91, 1
      %p95 = scmp.eq.s32.totalorder %s15, 1
      %p96 = scmp.ne.s32.totalorder %s91, %s93
      %p97 = scmp.eq.s32.totalorder %s15, 0
      %p98 = por %p96, %p97
      %p99 = scmp.ne.s32.totalorder %s91, %s93
      %p100 = scmp.eq.s32.totalorder %s20, 1
      %p101 = por %p99, %p100
      %p102 = scmp.ne.s32.totalorder %s93, %s94
      %p103 = scmp.eq.s32.totalorder %s20, 0
      %p104 = por %p102, %p103
      %p105 = scmp.ne.s32.totalorder %s93, %s94
      %p106 = scmp.eq.s32.totalorder %s21, 1
      %p107 = por %p105, %p106
      %p109 = scmp.ne.s32.totalorder %s94, %s108
      %p110 = scmp.eq.s32.totalorder %s21, 0
      %p111 = por %p109, %p110
      %s113 = sadd.s32 %s112, 1
      %p116 = scmp.eq.s32.totalorder %s15, 1
      %p117 = scmp.ne.s32.totalorder %s112, %s114
      %p118 = scmp.eq.s32.totalorder %s15, 0
      %p119 = por %p117, %p118
      %p120 = scmp.ne.s32.totalorder %s112, %s114
      %p121 = scmp.eq.s32.totalorder %s20, 1
      %p122 = por %p120, %p121
      %p123 = scmp.ne.s32.totalorder %s114, %s115
      %p124 = scmp.eq.s32.totalorder %s20, 0
      %p125 = por %p123, %p124
      %p126 = scmp.ne.s32.totalorder %s114, %s115
      %p127 = scmp.eq.s32.totalorder %s21, 1
      %p128 = por %p126, %p127
      %p130 = scmp.ne.s32.totalorder %s115, %s129
      %p131 = scmp.eq.s32.totalorder %s21, 0
      %p132 = por %p130, %p131
      %s134 = sadd.s32 %s133, 1
      %p137 = scmp.eq.s32.totalorder %s15, 1
      %p138 = scmp.ne.s32.totalorder %s133, %s135
      %p139 = scmp.eq.s32.totalorder %s15, 0
      %p140 = por %p138, %p139
      %p141 = scmp.ne.s32.totalorder %s133, %s135
      %p142 = scmp.eq.s32.totalorder %s20, 1
      %p143 = por %p141, %p142
      %p144 = scmp.ne.s32.totalorder %s135, %s136
      %p145 = scmp.eq.s32.totalorder %s20, 0
      %p146 = por %p144, %p145
      %p147 = scmp.ne.s32.totalorder %s135, %s136
      %p148 = scmp.eq.s32.totalorder %s21, 1
      %p149 = por %p147, %p148
      %p151 = scmp.ne.s32.totalorder %s136, %s150
      %p152 = scmp.eq.s32.totalorder %s21, 0
      %p153 = por %p151, %p152
      %s155 = sadd.s32 %s154, 1
      %p158 = scmp.eq.s32.totalorder %s15, 1
      %p159 = scmp.ne.s32.totalorder %s154, %s156
      %p160 = scmp.eq.s32.totalorder %s15, 0
      %p161 = por %p159, %p160
      %p162 = scmp.ne.s32.totalorder %s154, %s156
      %p163 = scmp.eq.s32.totalorder %s20, 1
      %p164 = por %p162, %p163
      %p165 = scmp.ne.s32.totalorder %s156, %s157
      %p166 = scmp.eq.s32.totalorder %s20, 0
      %p167 = por %p165, %p166
      %p168 = scmp.ne.s32.totalorder %s156, %s157
      %p169 = scmp.eq.s32.totalorder %s21, 1
      %p170 = por %p168, %p169
      %p172 = scmp.ne.s32.totalorder %s157, %s171
      %p173 = scmp.eq.s32.totalorder %s21, 0
      %p174 = por %p172, %p173
      %s175 = ssub.s32 %s22, %s34
      %s176 = ssub.s32 %s23, %s30
      %s177 = sor.u32 %s175, %s176
      %p178 = scmp.eq.s32.totalorder %s177, 0
      %s180 = sadd.s32 %s179, 1
      %s181 = scalar_select %p178, %s179, %s180
      %p184 = pneg %p178
      %p185 = scmp.eq.s32.totalorder %s15, 1
      %p186 = por %p184, %p185
      %p187 = scmp.ne.s32.totalorder %s179, %s182
      %p188 = scmp.eq.s32.totalorder %s15, 0
      %p189 = por %p187, %p188
      %p190 = scmp.ne.s32.totalorder %s179, %s182
      %p191 = scmp.eq.s32.totalorder %s20, 1
      %p192 = por %p190, %p191
      %p193 = scmp.ne.s32.totalorder %s182, %s183
      %p194 = scmp.eq.s32.totalorder %s20, 0
      %p195 = por %p193, %p194
      %p196 = scmp.ne.s32.totalorder %s182, %s183
      %p197 = scmp.eq.s32.totalorder %s21, 1
      %p198 = por %p196, %p197
      %p200 = scmp.ne.s32.totalorder %s183, %s199
      %p201 = scmp.eq.s32.totalorder %s21, 0
      %p202 = por %p200, %p201
      %p203 = scmp.le.s32.totalorder 1, %s15
      %p204 = scmp.lt.s32.totalorder %s15, 3
      %p205 = pnand %p203, %p204
      %p206 = pneg %p205
      // Predicated region
      $region9: #{tpu_custom_call.1} parent=5 // pred_check
        _
      $region10: #{tpu_custom_call.1} parent=5 // pred_check_branch
        %208 = sbr.rel (%p205) target = $region12
      $region11: #{tpu_custom_call.1} parent=5 // pred_region
        %s209 = ssub.s32 %s15, 1
        // Predicated region
        $region13: #{tpu_custom_call.1} parent=11 // pred_check
          %p210 = pneg %p104
        $region14: #{tpu_custom_call.1} parent=11 // pred_check_branch
          %212 = sbr.rel (%p210) target = $region16
        $region15: #{tpu_custom_call.1} parent=11 // pred_region
          _
        $region16: #{tpu_custom_call.1} parent=11 // pred_fallthru
          _
        // Predicated region
        $region17: #{tpu_custom_call.1} parent=11 // pred_check
          %p213 = pneg %p125
        $region18: #{tpu_custom_call.1} parent=11 // pred_check_branch
          %215 = sbr.rel (%p213) target = $region20
        $region19: #{tpu_custom_call.1} parent=11 // pred_region
          _
        $region20: #{tpu_custom_call.1} parent=11 // pred_fallthru
          _
        // Predicated region
        $region21: #{tpu_custom_call.1} parent=11 // pred_check
          %p216 = pneg %p146
        $region22: #{tpu_custom_call.1} parent=11 // pred_check_branch
          %218 = sbr.rel (%p216) target = $region24
        $region23: #{tpu_custom_call.1} parent=11 // pred_region
          _
        $region24: #{tpu_custom_call.1} parent=11 // pred_fallthru
          _
        // Predicated region
        $region25: #{tpu_custom_call.1} parent=11 // pred_check
          %p219 = pneg %p167
        $region26: #{tpu_custom_call.1} parent=11 // pred_check_branch
          %221 = sbr.rel (%p219) target = $region28
        $region27: #{tpu_custom_call.1} parent=11 // pred_region
          _
        $region28: #{tpu_custom_call.1} parent=11 // pred_fallthru
          _
      $region12: #{tpu_custom_call.1} parent=5 // pred_fallthru
        _
      %p222 = scmp.lt.s32.totalorder %s15, 2
      // Predicated region
      $region29: #{tpu_custom_call.1} parent=5 // pred_check
        %p223 = pneg %p222
      $region30: #{tpu_custom_call.1} parent=5 // pred_check_branch
        %225 = sbr.rel (%p223) target = $region32
      $region31: #{tpu_custom_call.1} parent=5 // pred_region
        // Predicated region
        $region33: #{tpu_custom_call.1} parent=31 // pred_check
          %p226 = pneg %p49
        $region34: #{tpu_custom_call.1} parent=31 // pred_check_branch
          %228 = sbr.rel (%p226) target = $region36
        $region35: #{tpu_custom_call.1} parent=31 // pred_region
          %p229 = scmp.lt.s32.totalorder %s22, 1
          %s230 = scalar_select %p229, %s22, 1
          %p231 = scmp.lt.s32.totalorder %s23, 0
          %s232 = scalar_select %p231, %s23, 0
          %s233 = smul.addr %s230, 2
          %s234 = sadd.s32 %s232, %s233
          %s235 = smul.addr %s234, 8
          %s236 = scalar_lea.vmem %s0, %s235
        $region36: #{tpu_custom_call.1} parent=31 // pred_fallthru
          _
        // Predicated region
        $region37: #{tpu_custom_call.1} parent=31 // pred_check
          %p237 = pneg %p77
        $region38: #{tpu_custom_call.1} parent=31 // pred_check_branch
          %239 = sbr.rel (%p237) target = $region40
        $region39: #{tpu_custom_call.1} parent=31 // pred_region
          %p240 = scmp.lt.s32.totalorder %s22, 1
          %s241 = scalar_select %p240, %s22, 1
          %p242 = scmp.lt.s32.totalorder %s23, 0
          %s243 = scalar_select %p242, %s23, 0
          %s244 = smul.addr %s243, 2
          %s245 = smul.addr %s241, 2
          %s246 = sadd.s32 %s244, %s245
          %s247 = smul.addr %s246, 8
          %s248 = scalar_lea.vmem %s1, %s247
        $region40: #{tpu_custom_call.1} parent=31 // pred_fallthru
          _
      $region32: #{tpu_custom_call.1} parent=5 // pred_fallthru
        _
      %p249 = scmp.le.s32.totalorder 1, %s15
      %p250 = scmp.lt.s32.totalorder %s15, 3
      %p251 = pnand %p249, %p250
      %p252 = pneg %p251
      // Predicated region
      $region41: #{tpu_custom_call.1} parent=5 // pred_check
        _
      $region42: #{tpu_custom_call.1} parent=5 // pred_check_branch
        %254 = sbr.rel (%p251) target = $region44
      $region43: #{tpu_custom_call.1} parent=5 // pred_region
        %s255 = ssub.s32 %s15, 1
        %p256 = scmp.lt.s32.totalorder %s24, 1
        %s257 = scalar_select %p256, %s24, 1
        %p258 = scmp.lt.s32.totalorder %s25, 0
        %s259 = scalar_select %p258, %s25, 0
        %s260 = smul.addr %s257, 2
        %s261 = sadd.s32 %s259, %s260
        %s262 = smul.addr %s261, 8
        %s263 = scalar_lea.vmem %s0, %s262
        %p264 = pneg %p55
        %p265 = pneg %p52
        %p266 = scmp.lt.s32.totalorder %s24, 1
        %s267 = scalar_select %p266, %s24, 1
        %p268 = scmp.lt.s32.totalorder %s25, 0
        %s269 = scalar_select %p268, %s25, 0
        %s270 = smul.addr %s269, 2
        %s271 = smul.addr %s267, 2
        %s272 = sadd.s32 %s270, %s271
        %s273 = smul.addr %s272, 8
        %s274 = scalar_lea.vmem %s1, %s273
        %p275 = pneg %p83
        %p276 = pneg %p80
        %p277 = pneg %p104
        %p278 = pneg %p101
        %p279 = pneg %p125
        %p280 = pneg %p122
        %p281 = pneg %p146
        %p282 = pneg %p143
        %p283 = pneg %p167
        %p284 = pneg %p164
        %p285 = pneg %p195
        %p286 = pneg %p192
        %s287 = sand.u32 %s182, 1
        %s288 = scalar_lea.sflag [#allocation3], %s287
        %s289 = sand.u32 %s182, 1
        %s290 = smul.addr %s289, 8
        %s291 = scalar_lea.vmem [#allocation2], %s290
        %p292 = scmp.lt.s32.totalorder %s24, 1
        %s293 = scalar_select %p292, %s24, 1
        %p294 = scmp.lt.s32.totalorder %s25, 0
        %s295 = scalar_select %p294, %s25, 0
        %s296 = smul.addr %s293, 2
        %s297 = sadd.s32 %s295, %s296
        %s298 = smul.addr %s297, 8
        %s299 = scalar_lea.vmem %s0, %s298
        %p300 = scmp.lt.s32.totalorder %s24, 1
        %s301 = scalar_select %p300, %s24, 1
        %p302 = scmp.lt.s32.totalorder %s25, 0
        %s303 = scalar_select %p302, %s25, 0
        %s304 = smul.addr %s303, 2
        %s305 = smul.addr %s301, 2
        %s306 = sadd.s32 %s304, %s305
        %s307 = smul.addr %s306, 8
        %s308 = scalar_lea.vmem %s1, %s307
        %v309 = vld [vmem:[%s299] sm:$0xff]
        %v310 = vld [vmem:[%s299 + $0x8] sm:$0xff]
        %v311 = vld [vmem:[%s308] sm:$0xff]
        %v312 = vld [vmem:[%s308 + $0x8] sm:$0xff]
        %314 = vrot.lane.b32.xlu0 %v309, 127
        %v315 = vpop.permute.xlu0 %314
        %318 = vrot.lane.b32.xlu0 %v311, 127
        %v319 = vpop.permute.xlu0 %318
        %vm321 = vcmask 1039360
        %v322 = vsel %vm321, %v315, %v319
        %324 = vrot.lane.b32.xlu0 %v310, 1
        %v325 = vpop.permute.xlu0 %324
        %vm327 = vcmask 7168
        %v328 = vsel %vm327, %v312, %v325
        %v329 = vld [vmem:[%s2] sm:$0xff]
        %v330 = vld [vmem:[%s3] sm:$0xff]
        %vm331 = vcmask 64512
        %v333 = vsel %vm331, %v330, 0
        %335 = vmatprep.subr.mxu0 0.0
        %336 = vmatpush1.msra.mxu0 %v322
        %337 = vmatprep.subr.mxu0 0.0
        %338 = vmatpush1.msra.mxu0 0.0
        %339 = vmatprep.subr.mxu0 0.0
        %340 = vmatpush1.msra.mxu0 0.0
        %341 = vmatprep.subr.mxu0 0.0
        %342 = vmatpush1.msra.mxu0 0.0
        %343 = vmatprep.subr.mxu0 0.0
        %344 = vmatpush1.msra.mxu0 0.0
        %345 = vmatprep.subr.mxu0 0.0
        %346 = vmatpush1.msra.mxu0 0.0
        %347 = vmatprep.subr.mxu0 0.0
        %348 = vmatpush1.msra.mxu0 0.0
        %349 = vmatprep.subr.mxu0 0.0
        %350 = vmatpush1.msra.mxu0 0.0
        %351 = vmatprep.subr.mxu0 0.0
        %352 = vmatpush1.msra.mxu0 0.0
        %353 = vmatprep.subr.mxu0 0.0
        %354 = vmatpush1.msra.mxu0 0.0
        %355 = vmatprep.subr.mxu0 0.0
        %356 = vmatpush1.msra.mxu0 0.0
        %357 = vmatprep.subr.mxu0 0.0
        %358 = vmatpush1.msra.mxu0 0.0
        %359 = vmatprep.subr.mxu0 0.0
        %360 = vmatpush1.msra.mxu0 0.0
        %361 = vmatprep.subr.mxu0 0.0
        %362 = vmatpush1.msra.mxu0 0.0
        %363 = vmatprep.subr.mxu0 0.0
        %364 = vmatpush1.msra.mxu0 0.0
        %365 = vmatprep.subr.mxu0 0.0
        %366 = vmatpush1.msra.mxu0 0.0
        %367 = vmatprep.subr.mxu0 0.0
        %368 = vmatpush1.msra.mxu0 0.0
        %369 = vmatprep.subr.mxu0 0.0
        %370 = vmatpush1.msra.mxu0 0.0
        %371 = vmatprep.subr.mxu0 0.0
        %372 = vmatpush1.msra.mxu0 0.0
        %373 = vmatprep.subr.mxu0 0.0
        %374 = vmatpush1.msra.mxu0 0.0
        %375 = vmatprep.subr.mxu0 0.0
        %376 = vmatpush1.msra.mxu0 0.0
        %377 = vmatprep.subr.mxu0 0.0
        %378 = vmatpush1.msra.mxu0 0.0
        %379 = vmatprep.subr.mxu0 0.0
        %380 = vmatpush1.msra.mxu0 0.0
        %381 = vmatprep.subr.mxu0 0.0
        %382 = vmatpush1.msra.mxu0 0.0
        %383 = vmatprep.subr.mxu0 0.0
        %384 = vmatpush1.msra.mxu0 0.0
        %385 = vmatprep.subr.mxu0 0.0
        %386 = vmatpush1.msra.mxu0 0.0
        %387 = vmatprep.subr.mxu0 0.0
        %388 = vmatpush1.msra.mxu0 0.0
        %389 = vmatprep.subr.mxu0 0.0
        %390 = vmatpush1.msra.mxu0 0.0
        %391 = vmatprep.subr.mxu0 0.0
        %392 = vmatpush1.msra.mxu0 0.0
        %393 = vmatprep.subr.mxu0 0.0
        %394 = vmatpush1.msra.mxu0 0.0
        %395 = vmatprep.subr.mxu0 0.0
        %396 = vmatpush1.msra.mxu0 0.0
        %397 = vmatprep.subr.mxu0 0.0
        %398 = vmatpush1.msra.mxu0 0.0
        %399 = vmatprep.mubr.f32.mxu0 0.0
        %400 = vmatmul.mubr.f32.gmra.mrb[0].mxu0 %v333
        %v401 = vpop.f32.mrb[0].mxu0
        %v402 = vadd.f32 0.0, %v401
        %v403 = vpop.f32.mrb[0].mxu0
        %404 = vdwg.mxu0
        %vm405 = vcmask 130048
        %v407 = vsel %vm405, %v329, 0
        %409 = vmatprep.subr.mxu0 0.0
        %410 = vmatpush1.msra.mxu0 %v309
        %411 = vmatprep.subr.mxu0 0.0
        %412 = vmatpush1.msra.mxu0 %v310
        %413 = vmatprep.subr.mxu0 0.0
        %414 = vmatpush1.msra.mxu0 0.0
        %415 = vmatprep.subr.mxu0 0.0
        %416 = vmatpush1.msra.mxu0 0.0
        %417 = vmatprep.subr.mxu0 0.0
        %418 = vmatpush1.msra.mxu0 0.0
        %419 = vmatprep.subr.mxu0 0.0
        %420 = vmatpush1.msra.mxu0 0.0
        %421 = vmatprep.subr.mxu0 0.0
        %422 = vmatpush1.msra.mxu0 0.0
        %423 = vmatprep.subr.mxu0 0.0
        %424 = vmatpush1.msra.mxu0 0.0
        %425 = vmatprep.subr.mxu0 0.0
        %426 = vmatpush1.msra.mxu0 0.0
        %427 = vmatprep.subr.mxu0 0.0
        %428 = vmatpush1.msra.mxu0 0.0
        %429 = vmatprep.subr.mxu0 0.0
        %430 = vmatpush1.msra.mxu0 0.0
        %431 = vmatprep.subr.mxu0 0.0
        %432 = vmatpush1.msra.mxu0 0.0
        %433 = vmatprep.subr.mxu0 0.0
        %434 = vmatpush1.msra.mxu0 0.0
        %435 = vmatprep.subr.mxu0 0.0
        %436 = vmatpush1.msra.mxu0 0.0
        %437 = vmatprep.subr.mxu0 0.0
        %438 = vmatpush1.msra.mxu0 0.0
        %439 = vmatprep.subr.mxu0 0.0
        %440 = vmatpush1.msra.mxu0 0.0
        %441 = vmatprep.subr.mxu0 0.0
        %442 = vmatpush1.msra.mxu0 0.0
        %443 = vmatprep.subr.mxu0 0.0
        %444 = vmatpush1.msra.mxu0 0.0
        %445 = vmatprep.subr.mxu0 0.0
        %446 = vmatpush1.msra.mxu0 0.0
        %447 = vmatprep.subr.mxu0 0.0
        %448 = vmatpush1.msra.mxu0 0.0
        %449 = vmatprep.subr.mxu0 0.0
        %450 = vmatpush1.msra.mxu0 0.0
        %451 = vmatprep.subr.mxu0 0.0
        %452 = vmatpush1.msra.mxu0 0.0
        %453 = vmatprep.subr.mxu0 0.0
        %454 = vmatpush1.msra.mxu0 0.0
        %455 = vmatprep.subr.mxu0 0.0
        %456 = vmatpush1.msra.mxu0 0.0
        %457 = vmatprep.subr.mxu0 0.0
        %458 = vmatpush1.msra.mxu0 0.0
        %459 = vmatprep.subr.mxu0 0.0
        %460 = vmatpush1.msra.mxu0 0.0
        %461 = vmatprep.subr.mxu0 0.0
        %462 = vmatpush1.msra.mxu0 0.0
        %463 = vmatprep.subr.mxu0 0.0
        %464 = vmatpush1.msra.mxu0 0.0
        %465 = vmatprep.subr.mxu0 0.0
        %466 = vmatpush1.msra.mxu0 0.0
        %467 = vmatprep.subr.mxu0 0.0
        %468 = vmatpush1.msra.mxu0 0.0
        %469 = vmatprep.subr.mxu0 0.0
        %470 = vmatpush1.msra.mxu0 0.0
        %471 = vmatprep.subr.mxu0 0.0
        %472 = vmatpush1.msra.mxu0 0.0
        %473 = vmatprep.mubr.f32.mxu0 0.0
        %474 = vmatmul.mubr.f32.gmra.mrb[0].mxu0 %v407
        %v475 = vpop.f32.mrb[0].mxu0
        %v476 = vadd.f32 %v402, %v475
        %v477 = vpop.f32.mrb[0].mxu0
        %478 = vdwg.mxu0
        %v479 = vld [vmem:[%s4] sm:$0xff]
        %v481 = vsel %vm331, %v479, 0
        %483 = vmatprep.subr.mxu0 0.0
        %484 = vmatpush1.msra.mxu0 %v328
        %485 = vmatprep.subr.mxu0 0.0
        %486 = vmatpush1.msra.mxu0 0.0
        %487 = vmatprep.subr.mxu0 0.0
        %488 = vmatpush1.msra.mxu0 0.0
        %489 = vmatprep.subr.mxu0 0.0
        %490 = vmatpush1.msra.mxu0 0.0
        %491 = vmatprep.subr.mxu0 0.0
        %492 = vmatpush1.msra.mxu0 0.0
        %493 = vmatprep.subr.mxu0 0.0
        %494 = vmatpush1.msra.mxu0 0.0
        %495 = vmatprep.subr.mxu0 0.0
        %496 = vmatpush1.msra.mxu0 0.0
        %497 = vmatprep.subr.mxu0 0.0
        %498 = vmatpush1.msra.mxu0 0.0
        %499 = vmatprep.subr.mxu0 0.0
        %500 = vmatpush1.msra.mxu0 0.0
        %501 = vmatprep.subr.mxu0 0.0
        %502 = vmatpush1.msra.mxu0 0.0
        %503 = vmatprep.subr.mxu0 0.0
        %504 = vmatpush1.msra.mxu0 0.0
        %505 = vmatprep.subr.mxu0 0.0
        %506 = vmatpush1.msra.mxu0 0.0
        %507 = vmatprep.subr.mxu0 0.0
        %508 = vmatpush1.msra.mxu0 0.0
        %509 = vmatprep.subr.mxu0 0.0
        %510 = vmatpush1.msra.mxu0 0.0
        %511 = vmatprep.subr.mxu0 0.0
        %512 = vmatpush1.msra.mxu0 0.0
        %513 = vmatprep.subr.mxu0 0.0
        %514 = vmatpush1.msra.mxu0 0.0
        %515 = vmatprep.subr.mxu0 0.0
        %516 = vmatpush1.msra.mxu0 0.0
        %517 = vmatprep.subr.mxu0 0.0
        %518 = vmatpush1.msra.mxu0 0.0
        %519 = vmatprep.subr.mxu0 0.0
        %520 = vmatpush1.msra.mxu0 0.0
        %521 = vmatprep.subr.mxu0 0.0
        %522 = vmatpush1.msra.mxu0 0.0
        %523 = vmatprep.subr.mxu0 0.0
        %524 = vmatpush1.msra.mxu0 0.0
        %525 = vmatprep.subr.mxu0 0.0
        %526 = vmatpush1.msra.mxu0 0.0
        %527 = vmatprep.subr.mxu0 0.0
        %528 = vmatpush1.msra.mxu0 0.0
        %529 = vmatprep.subr.mxu0 0.0
        %530 = vmatpush1.msra.mxu0 0.0
        %531 = vmatprep.subr.mxu0 0.0
        %532 = vmatpush1.msra.mxu0 0.0
        %533 = vmatprep.subr.mxu0 0.0
        %534 = vmatpush1.msra.mxu0 0.0
        %535 = vmatprep.subr.mxu0 0.0
        %536 = vmatpush1.msra.mxu0 0.0
        %537 = vmatprep.subr.mxu0 0.0
        %538 = vmatpush1.msra.mxu0 0.0
        %539 = vmatprep.subr.mxu0 0.0
        %540 = vmatpush1.msra.mxu0 0.0
        %541 = vmatprep.subr.mxu0 0.0
        %542 = vmatpush1.msra.mxu0 0.0
        %543 = vmatprep.subr.mxu0 0.0
        %544 = vmatpush1.msra.mxu0 0.0
        %545 = vmatprep.subr.mxu0 0.0
        %546 = vmatpush1.msra.mxu0 0.0
        %547 = vmatprep.mubr.f32.mxu0 0.0
        %548 = vmatmul.mubr.f32.gmra.mrb[0].mxu0 %v481
        %v549 = vpop.f32.mrb[0].mxu0
        %v550 = vadd.f32 0.0, %v549
        %v551 = vpop.f32.mrb[0].mxu0
        %552 = vdwg.mxu0
        %v553 = vadd.f32 %v476, %v550
        %v554 = vld [vmem:[%s5] sm:$0xff]
        %556 = vset.pattern.permute.xlu0 0
        %557 = vperm.xlu0 %556, %v554
        %v558 = vpop.permute.xlu0 %557
        %v560 = vadd.f32 %v553, %v558
        %561 = vst [vmem:[%s291] sm:$0xff] %v560
        %s562 = sand.u32 %s182, 1
        %s563 = scalar_lea.sflag [#allocation3], %s562
        %s564 = sand.u32 %s182, 1
        %s565 = smul.addr %s564, 8
        %s566 = scalar_lea.vmem [#allocation2], %s565
        // Predicated region
        $region45: #{tpu_custom_call.1} parent=43 // pred_check
          %p567 = pneg %p192
        $region46: #{tpu_custom_call.1} parent=43 // pred_check_branch
          %569 = sbr.rel (%p567) target = $region48
        $region47: #{tpu_custom_call.1} parent=43 // pred_region
          %s571 = ssub.s32 128, 128
          %572 = vsyncadd %s563, %s571
          %s573 = sadd.s32 %s25, %s24
          %s574 = smul.addr %s573, 128
          %s575 = scalar_lea.hbm %s6, %s574
          %s577 = sshll.u32 %s566, 4
          %s578 = int_to_ptr.vmem [resolvable:$true] %s577
          %580 = dma.vmem_to_hbm [thread:$0]  %s578, 128, %s575, %s563
        $region48: #{tpu_custom_call.1} parent=43 // pred_fallthru
          _
      $region44: #{tpu_custom_call.1} parent=5 // pred_fallthru
        _
      %p581 = scmp.le.s32.totalorder 2, %s15
      // Predicated region
      $region49: #{tpu_custom_call.1} parent=5 // pred_check
        %p582 = pneg %p581
      $region50: #{tpu_custom_call.1} parent=5 // pred_check_branch
        %584 = sbr.rel (%p582) target = $region52
      $region51: #{tpu_custom_call.1} parent=5 // pred_region
        %s585 = ssub.s32 %s15, 2
        // Predicated region
        $region53: #{tpu_custom_call.1} parent=51 // pred_check
          %p586 = pneg %p198
        $region54: #{tpu_custom_call.1} parent=51 // pred_check_branch
          %588 = sbr.rel (%p586) target = $region56
        $region55: #{tpu_custom_call.1} parent=51 // pred_region
          %s589 = sand.u32 %s183, 1
          %s590 = scalar_lea.sflag [#allocation3], %s589
          %s591 = sand.u32 %s183, 1
          %s592 = smul.addr %s591, 8
          %s593 = scalar_lea.vmem [#allocation2], %s592
          %594 = dma.done %s590, 128
        $region56: #{tpu_custom_call.1} parent=51 // pred_fallthru
          _
      $region52: #{tpu_custom_call.1} parent=5 // pred_fallthru
        _
    $region6: #{tpu_custom_call.1} parent=1 // loop_footer
      %s19 = sadd.s32 1, %s15
    $region7: #{tpu_custom_call.1} parent=1 // loop_footer_branch
      %14 = sbr.rel target = $region3
    $region8: #{tpu_custom_call.1} parent=1 // loop_exit
      _
    %595 = vsyncpa [#allocation3], 1
    %s596 = scalar_lea.sflag [#allocation3], 1
    %597 = vsyncpa %s596, 1

</llo_original>
